<compile_context>
chip_gen: v5e
topology: v5e:2x2
jax: 0.10.0
libtpu: 0.0.40
codegen_flags: <defaults>
</compile_context>

<pallas_src>
import functools

import jax
import jax.numpy as jnp
from jax.experimental import pallas as pl
from jax.experimental.pallas import tpu as pltpu

_LANE = 128
_SUBLANE = 8
_TARGET_BLOCK_BYTES = 1 << 20      # ~1 MiB per block buffer
_MIN_PALLAS_BYTES = 1 << 15        # below 32 KiB, plain jnp (XLA fuses) wins


def _choose_tiles(rows, cols, itemsize):
    """Pick a (row_tile, lane_tile) that is lane/sublane legal and ~1 MiB."""
    rt0 = rows if rows <= _SUBLANE else _SUBLANE
    if cols <= _LANE:
        lane_tile = cols                                   # full dim -> legal
    else:
        lt_cap = max(_LANE,
                     (_TARGET_BLOCK_BYTES // (itemsize * rt0)) // _LANE * _LANE)
        lane_tile = min((cols // _LANE) * _LANE, lt_cap)   # multiple of 128
    if rows <= _SUBLANE:
        row_tile = rows                                    # full dim -> legal
    else:
        rt_cap = max(_SUBLANE,
                     (_TARGET_BLOCK_BYTES // (itemsize * lane_tile))
                     // _SUBLANE * _SUBLANE)
        row_tile = min((rows // _SUBLANE) * _SUBLANE, rt_cap)
    return row_tile, lane_tile


def _make_kernel(add_vals, lane_tile):
    """Kernel: out = x + ambient, ambient reconstructed per-lane from constants."""
    vals = tuple(float(v) for v in add_vals)
    num_ch = len(vals)
    uniform = all(v == vals[0] for v in vals)

    def kernel(x_ref, o_ref):
        x = x_ref[...].astype(jnp.float32)
        if uniform:
            y = x + jnp.float32(vals[0])
        else:
            # Global flattened column index of each lane -> channel = col % C.
            col0 = pl.program_id(1) * lane_tile
            col = col0 + jax.lax.broadcasted_iota(jnp.int32, x_ref.shape, 1)
            ch = col % num_ch
            add = jnp.float32(vals[-1])
            for k in range(num_ch - 2, -1, -1):
                add = jnp.where(ch == k, jnp.float32(vals[k]), add)
            y = x + add
        o_ref[...] = y.astype(o_ref.dtype)

    return kernel


def ambient_lighting(light, light_intensity=0.5, light_color=(1.0, 1.0, 1.0),
                     *, inplace=False):
    """light: f32[B, N, C] -> f32[B, N, C] (C == len(light_color), normally 3)."""
    light = jnp.asarray(light)
    B, N, C = light.shape
    vals = tuple(float(light_intensity) * float(c) for c in light_color)
    if len(vals) != C:
        raise ValueError("light_color length must match last dim of light")

    total_bytes = light.size * light.dtype.itemsize
    if total_bytes < _MIN_PALLAS_BYTES:
        # Pallas launch overhead is not worth it; XLA fuses this for free.
        add = jnp.asarray(vals, jnp.float32).reshape((1, 1, C))
        return (light.astype(jnp.float32) + add).astype(light.dtype)

    cols = N * C
    x2 = light.reshape(B, cols)          # free: merge of trailing contiguous dims
    row_tile, lane_tile = _choose_tiles(B, cols, light.dtype.itemsize)
    grid = (pl.cdiv(B, row_tile), pl.cdiv(cols, lane_tile))

    kernel = _make_kernel(vals, lane_tile)

    out2 = pl.pallas_call(
        kernel,
        out_shape=jax.ShapeDtypeStruct((B, cols), light.dtype),
        grid=grid,
        in_specs=[pl.BlockSpec((row_tile, lane_tile), lambda i, j: (i, j))],
        out_specs=pl.BlockSpec((row_tile, lane_tile), lambda i, j: (i, j)),
        compiler_params=pltpu.CompilerParams(
            dimension_semantics=("parallel", "parallel")),
        input_output_aliases=({0: 0} if inplace else {}),
    )(x2)
    return out2.reshape(B, N, C)


class AmbientLighting:
    """JAX/Pallas port of soft_renderer.lighting.AmbientLighting."""

    def __init__(self, light_intensity=0.5, light_color=(1.0, 1.0, 1.0)):
        self.light_intensity = float(light_intensity)
        self.light_color = tuple(float(c) for c in light_color)

    def __call__(self, light):
        return ambient_lighting(light, self.light_intensity, self.light_color)


if __name__ == "__main__":
    key = jax.random.PRNGKey(0)
    k1, k2, k3 = jax.random.split(key, 3)

    # 1) Pallas path, default uniform light color (scalar-add fast path).
    B, N, C = 2, 4096, 3
    light1 = jax.random.uniform(k1, (B, N, C), dtype=jnp.float32)
    mod1 = AmbientLighting(light_intensity=0.5, light_color=(1.0, 1.0, 1.0))
    out1 = jax.block_until_ready(mod1(light1))
    ref1 = light1 + 0.5 * jnp.asarray((1.0, 1.0, 1.0), jnp.float32)[None, None, :]
    assert out1.shape == light1.shape and out1.dtype == light1.dtype
    assert jnp.allclose(out1, ref1, atol=1e-6), "mismatch vs reference (uniform)"

    # 2) Pallas path, per-channel color + ragged lane extent (masked edge block,
    #    iota-based channel reconstruction).
    B2, N2 = 2, 3333
    light2 = jax.random.uniform(k2, (B2, N2, C), dtype=jnp.float32)
    mod2 = AmbientLighting(light_intensity=0.7, light_color=(0.9, 0.5, 0.2))
    out2 = jax.block_until_ready(mod2(light2))
    ref2 = light2 + 0.7 * jnp.asarray((0.9, 0.5, 0.2), jnp.float32)[None, None, :]
    assert jnp.allclose(out2, ref2, atol=1e-6), "mismatch vs reference (colored)"

    # 3) Tiny input -> fused jnp fallback.
    light3 = jax.random.uniform(k3, (2, 16, C), dtype=jnp.float32)
    out3 = jax.block_until_ready(AmbientLighting()(light3))
    ref3 = light3 + 0.5
    assert jnp.allclose(out3, ref3, atol=1e-6), "mismatch vs reference (tiny)"

    print("KERNEL_OK")
</pallas_src>

<mosaic_0001>
module attributes {stable_mosaic.version = 11 : i64} {
  func.func @kernel(%arg0: i32, %arg1: i32, %arg2: memref<2x12288xf32, #tpu.memory_space<vmem>>, %arg3: memref<2x12288xf32, #tpu.memory_space<vmem>>) attributes {dimension_semantics = [#tpu.dimension_semantics<parallel>, #tpu.dimension_semantics<parallel>], iteration_bounds = array<i64: 1, 1>, scalar_prefetch = 0 : i64, scratch_operands = 0 : i64, tpu.core_type = #tpu.core_type<tc>, window_params = [{transform_indices = @transform_0, window_bounds = array<i64: 2, 12288>}, {transform_indices = @transform_1, window_bounds = array<i64: 2, 12288>}]} {
    %c0 = arith.constant 0 : index
    %c0_0 = arith.constant 0 : index
    %0 = vector.load %arg2[%c0, %c0_0] : memref<2x12288xf32, #tpu.memory_space<vmem>>, vector<2x12288xf32>
    %cst = arith.constant 5.000000e-01 : f32
    %1 = vector.broadcast %cst : f32 to vector<2x12288xf32>
    %2 = arith.addf %0, %1 : vector<2x12288xf32>
    %c0_1 = arith.constant 0 : index
    %c0_2 = arith.constant 0 : index
    %3 = vector.load %arg3[%c0_1, %c0_2] : memref<2x12288xf32, #tpu.memory_space<vmem>>, vector<2x12288xf32>
    tpu.vector_store %arg3[%c0_1, %c0_2], %2 {strides = array<i32>} : memref<2x12288xf32, #tpu.memory_space<vmem>>, vector<2x12288xf32>,
    return
  }
  func.func @transform_0(%arg0: i32, %arg1: i32) -> (i32, i32) {
    %c0_i32 = arith.constant 0 : i32
    return %arg0, %arg1 : i32, i32
  }
  func.func @transform_1(%arg0: i32, %arg1: i32) -> (i32, i32) {
    %c0_i32 = arith.constant 0 : i32
    return %arg0, %arg1 : i32, i32
  }
}

</mosaic_0001>

<llo_original>
// kernel: tpu_custom_call.1
$region0: #{tpu_custom_call.1}
  #allocation0 [shape = 'u32[]', space=smem, size = 0x4, offset = 0x4, fixed_abs, tag = 'smem constant byte address 0x4 - core index']
  #allocation1 [shape = 'u32[72,128]{1,0:T(1,128)}', space=vmem, size = 0x9000, scoped, tag = 'internal scratch']
  %s0 = inlined_call_operand.hbm [shape: f32[2,12288], index: 0, kind: input, shape index: {}]
  %s1 = inlined_call_operand.hbm [shape: f32[2,12288], index: 1, kind: output, shape index: {}]
  %s2 = sld [smem:[#allocation0]]
  $region18: #{tpu_custom_call.1} parent=0
    _
  %s4 = ssub.s32 1, %s2
  %s5 = scalar_select 0, %s4, %s2
  $region1: #{tpu_custom_call.1} parent=0
    #allocation2 [shape = 'u8[98304]{0}', space=vmem, size = 0x18000, scoped, tag = 'input window, operand 0, single buffered']
    #allocation3 [shape = 's32[1]{0}', space=sflag, size = 0x4, scoped, tag = 'scoped memory for tpu_custom_call.1']
    #allocation4 [shape = 's32[1]{0}', space=sflag, size = 0x4, scoped, tag = 'scoped memory for tpu_custom_call.1']
    #allocation5 [shape = 'u8[98304]{0}', space=vmem, size = 0x18000, scoped, tag = 'output window, operand 0, single buffered']
    %6 = vsyncpa [#allocation3], 0
    %7 = vsyncpa [#allocation4], 0
    // Predicated region
    $region2: #{tpu_custom_call.1} parent=1 // pred_check
      _
    $region3: #{tpu_custom_call.1} parent=1 // pred_check_branch
      %9 = sbr.rel (0) target = $region5
    $region4: #{tpu_custom_call.1} parent=1 // pred_region
      %11 = vsyncadd [#allocation3], 0
      %s13 = sshll.u32 %s0, 4
      %s14 = int_to_ptr.hbm [resolvable:$true] %s13
      %s15 = sshll.u32 [#allocation2], 4
      %s16 = int_to_ptr.vmem [resolvable:$true] %s15
      %18 = dma.hbm_to_vmem [thread:$0]  %s14, 3072, %s16, [#allocation3]
    $region5: #{tpu_custom_call.1} parent=1 // pred_fallthru
      _
    // Predicated region
    $region6: #{tpu_custom_call.1} parent=1 // pred_check
      _
    $region7: #{tpu_custom_call.1} parent=1 // pred_check_branch
      %20 = sbr.rel (0) target = $region9
    $region8: #{tpu_custom_call.1} parent=1 // pred_region
      %22 = dma.done [#allocation3], 3072
    $region9: #{tpu_custom_call.1} parent=1 // pred_fallthru
      _
    %v23 = vld [vmem:[#allocation2] sm:$0xff]
    %v24 = vld [vmem:[#allocation2 + $0x8] sm:$0xff]
    %v25 = vld [vmem:[#allocation2 + $0x10] sm:$0xff]
    %v26 = vld [vmem:[#allocation2 + $0x18] sm:$0xff]
    %v27 = vld [vmem:[#allocation2 + $0x20] sm:$0xff]
    %v28 = vld [vmem:[#allocation2 + $0x28] sm:$0xff]
    %v29 = vld [vmem:[#allocation2 + $0x30] sm:$0xff]
    %v30 = vld [vmem:[#allocation2 + $0x38] sm:$0xff]
    %v31 = vld [vmem:[#allocation2 + $0x40] sm:$0xff]
    %v32 = vld [vmem:[#allocation2 + $0x48] sm:$0xff]
    %v33 = vld [vmem:[#allocation2 + $0x50] sm:$0xff]
    %v34 = vld [vmem:[#allocation2 + $0x58] sm:$0xff]
    %v35 = vld [vmem:[#allocation2 + $0x60] sm:$0xff]
    %v36 = vld [vmem:[#allocation2 + $0x68] sm:$0xff]
    %v37 = vld [vmem:[#allocation2 + $0x70] sm:$0xff]
    %v38 = vld [vmem:[#allocation2 + $0x78] sm:$0xff]
    %v39 = vld [vmem:[#allocation2 + $0x80] sm:$0xff]
    %v40 = vld [vmem:[#allocation2 + $0x88] sm:$0xff]
    %v41 = vld [vmem:[#allocation2 + $0x90] sm:$0xff]
    %v42 = vld [vmem:[#allocation2 + $0x98] sm:$0xff]
    %v43 = vld [vmem:[#allocation2 + $0xa0] sm:$0xff]
    %v44 = vld [vmem:[#allocation2 + $0xa8] sm:$0xff]
    %v45 = vld [vmem:[#allocation2 + $0xb0] sm:$0xff]
    %v46 = vld [vmem:[#allocation2 + $0xb8] sm:$0xff]
    %v47 = vadd.f32 %v23, 0.5
    %v48 = vadd.f32 %v24, 0.5
    %v49 = vadd.f32 %v25, 0.5
    %v50 = vadd.f32 %v26, 0.5
    %v51 = vadd.f32 %v27, 0.5
    %v52 = vadd.f32 %v28, 0.5
    %v53 = vadd.f32 %v29, 0.5
    %v54 = vadd.f32 %v30, 0.5
    %v55 = vadd.f32 %v31, 0.5
    %v56 = vadd.f32 %v32, 0.5
    %v57 = vadd.f32 %v33, 0.5
    %v58 = vadd.f32 %v34, 0.5
    %v59 = vadd.f32 %v35, 0.5
    %v60 = vadd.f32 %v36, 0.5
    %v61 = vadd.f32 %v37, 0.5
    %v62 = vadd.f32 %v38, 0.5
    %v63 = vadd.f32 %v39, 0.5
    %v64 = vadd.f32 %v40, 0.5
    %v65 = vadd.f32 %v41, 0.5
    %v66 = vadd.f32 %v42, 0.5
    %v67 = vadd.f32 %v43, 0.5
    %v68 = vadd.f32 %v44, 0.5
    %v69 = vadd.f32 %v45, 0.5
    %v70 = vadd.f32 %v46, 0.5
    %71 = vst [vmem:[#allocation5] sm:$0xff] %v47
    %72 = vst [vmem:[#allocation5 + $0x8] sm:$0xff] %v48
    %73 = vst [vmem:[#allocation5 + $0x10] sm:$0xff] %v49
    %74 = vst [vmem:[#allocation5 + $0x18] sm:$0xff] %v50
    %75 = vst [vmem:[#allocation5 + $0x20] sm:$0xff] %v51
    %76 = vst [vmem:[#allocation5 + $0x28] sm:$0xff] %v52
    %77 = vst [vmem:[#allocation5 + $0x30] sm:$0xff] %v53
    %78 = vst [vmem:[#allocation5 + $0x38] sm:$0xff] %v54
    %79 = vst [vmem:[#allocation5 + $0x40] sm:$0xff] %v55
    %80 = vst [vmem:[#allocation5 + $0x48] sm:$0xff] %v56
    %81 = vst [vmem:[#allocation5 + $0x50] sm:$0xff] %v57
    %82 = vst [vmem:[#allocation5 + $0x58] sm:$0xff] %v58
    %83 = vst [vmem:[#allocation5 + $0x60] sm:$0xff] %v59
    %84 = vst [vmem:[#allocation5 + $0x68] sm:$0xff] %v60
    %85 = vst [vmem:[#allocation5 + $0x70] sm:$0xff] %v61
    %86 = vst [vmem:[#allocation5 + $0x78] sm:$0xff] %v62
    %87 = vst [vmem:[#allocation5 + $0x80] sm:$0xff] %v63
    %88 = vst [vmem:[#allocation5 + $0x88] sm:$0xff] %v64
    %89 = vst [vmem:[#allocation5 + $0x90] sm:$0xff] %v65
    %90 = vst [vmem:[#allocation5 + $0x98] sm:$0xff] %v66
    %91 = vst [vmem:[#allocation5 + $0xa0] sm:$0xff] %v67
    %92 = vst [vmem:[#allocation5 + $0xa8] sm:$0xff] %v68
    %93 = vst [vmem:[#allocation5 + $0xb0] sm:$0xff] %v69
    %94 = vst [vmem:[#allocation5 + $0xb8] sm:$0xff] %v70
    // Predicated region
    $region10: #{tpu_custom_call.1} parent=1 // pred_check
      _
    $region11: #{tpu_custom_call.1} parent=1 // pred_check_branch
      %96 = sbr.rel (0) target = $region13
    $region12: #{tpu_custom_call.1} parent=1 // pred_region
      %98 = vsyncadd [#allocation4], 0
      %s100 = sshll.u32 [#allocation5], 4
      %s101 = int_to_ptr.vmem [resolvable:$true] %s100
      %s102 = sshll.u32 %s1, 4
      %s103 = int_to_ptr.hbm [resolvable:$true] %s102
      %105 = dma.vmem_to_hbm [thread:$0]  %s101, 3072, %s103, [#allocation4]
    $region13: #{tpu_custom_call.1} parent=1 // pred_fallthru
      _
    // Predicated region
    $region14: #{tpu_custom_call.1} parent=1 // pred_check
      _
    $region15: #{tpu_custom_call.1} parent=1 // pred_check_branch
      %107 = sbr.rel (0) target = $region17
    $region16: #{tpu_custom_call.1} parent=1 // pred_region
      %109 = dma.done [#allocation4], 3072
    $region17: #{tpu_custom_call.1} parent=1 // pred_fallthru
      _
    %110 = vsyncpa [#allocation3], 1
    %111 = vsyncpa [#allocation4], 1

</llo_original>
